<compile_context>
chip_gen: v5e
topology: v5e:2x2
jax: 0.10.0
libtpu: 0.0.40
codegen_flags: <defaults>
</compile_context>

<pallas_src>
import functools

import jax
import jax.numpy as jnp
import numpy as np
from jax import lax
from jax.experimental import pallas as pl
from jax.experimental.pallas import tpu as pltpu

_LANE = 128


def _round_up(x, m):
    return (x + m - 1) // m * m


def _pad_axis(a, axis, size):
    if a.shape[axis] == size:
        return a
    cfg = [(0, 0)] * a.ndim
    cfg[axis] = (0, size - a.shape[axis])
    return jnp.pad(a, cfg)


def _shift_w(q, delta):
    """Shift a (rows, W, C) tile by one column along W, zero-filling the edge.

    delta=+1 -> value at (w-1) with zeros at w==0 ; delta=-1 -> value at (w+1)
    with zeros at w==W-1.
    """
    rows, w, c = q.shape
    zero_col = jnp.zeros((rows, 1, c), q.dtype)
    if delta == 1:
        return jnp.concatenate([zero_col, q[:, : w - 1, :]], axis=1)
    return jnp.concatenate([q[:, 1:, :], zero_col], axis=1)


def _conv3x3_fused(p_top, p_main, p_bot, w_ref, matmul_dtype):
    """3x3 'same' conv of one row tile given its 1-row halos (already edge-zeroed).

    p_* : (1 or TH, Wp, C) activations.  w_ref: (3, 3*C, Cout) weight slab
    indexed by dx, with the dy taps fused along K.  Returns f32 (TH*Wp, Cout).
    """
    th, wp, c = p_main.shape
    # Cast to the MXU input dtype *before* building the taps: all concat/shift
    # plumbing then runs at bf16 width (half the vreg / VMEM traffic); values
    # are cast before the dot either way so results are identical.
    p = jnp.concatenate([p_top, p_main, p_bot], axis=0).astype(matmul_dtype)  # (TH+2, Wp, C)
    # Fuse the three dy taps along the lane (channel) axis -> K = 3*C per dot.
    q = jnp.concatenate([p[0:th], p[1:th + 1], p[2:th + 2]], axis=-1)          # (TH, Wp, 3C)
    ql = _shift_w(q, +1)        # dx = 0 tap (value at w-1)
    qr = _shift_w(q, -1)        # dx = 2 tap (value at w+1)
    m, k = th * wp, 3 * c

    def mm(a, w_slab):
        return jnp.dot(a.reshape(m, k), w_slab, preferred_element_type=jnp.float32)

    return mm(ql, w_ref[0]) + mm(q, w_ref[1]) + mm(qr, w_ref[2])


def _stats(acc):
    """Per-channel one-pass (sum, sum_sq) of an f32 (M, C) tile -> (2, C)."""
    s = jnp.sum(acc, axis=0, keepdims=True)
    ss = jnp.sum(acc * acc, axis=0, keepdims=True)
    return jnp.concatenate([s, ss], axis=0)


# --------------------------- phase 1: pool + conv1 ---------------------------
def _pool_conv1_kernel(xm_ref, xt_ref, xb_ref, w_ref, y_ref, st_ref, *,
                       cin_p, matmul_dtype):
    i = pl.program_id(1)
    last = pl.num_programs(1) - 1

    def pool(blk):                                   # (r, 2, Wp, 2*Cp) -> (r, Wp, Cp)
        m = jnp.maximum(blk[:, 0], blk[:, 1])                       # H-parity max
        return jnp.maximum(m[..., :cin_p], m[..., cin_p:])          # W-parity max

    p_main = pool(xm_ref[0])
    p_top = pool(xt_ref[0]) * (i > 0).astype(p_main.dtype)          # zero halo at top edge
    p_bot = pool(xb_ref[0]) * (i < last).astype(p_main.dtype)       # zero halo at bottom edge

    acc = _conv3x3_fused(p_top, p_main, p_bot, w_ref, matmul_dtype)  # f32 (TH*Wp, Cm)
    y_ref[...] = acc.reshape(y_ref.shape).astype(y_ref.dtype)
    st_ref[0, 0] = _stats(acc)


# ------------------------ phase 2: BN1 + ReLU + conv2 ------------------------
def _bn_conv2_kernel(ym_ref, yt_ref, yb_ref, sc_ref, sh_ref, w_ref, y_ref, st_ref, *,
                     matmul_dtype):
    i = pl.program_id(1)
    last = pl.num_programs(1) - 1

    def bn_relu(v):                                  # BN affine + ReLU, f32 math
        return jnp.maximum(v.astype(jnp.float32) * sc_ref[0] + sh_ref[0], 0.0)

    h_main = bn_relu(ym_ref[0])
    h_top = bn_relu(yt_ref[0]) * (i > 0).astype(jnp.float32)
    h_bot = bn_relu(yb_ref[0]) * (i < last).astype(jnp.float32)

    acc = _conv3x3_fused(h_top, h_main, h_bot, w_ref, matmul_dtype)
    y_ref[...] = acc.reshape(y_ref.shape).astype(y_ref.dtype)
    st_ref[0, 0] = _stats(acc)


# --------------------------- phase 3: BN2 + ReLU -----------------------------
def _bn_relu_kernel(y_ref, sc_ref, sh_ref, o_ref):
    v = y_ref[...].astype(jnp.float32)
    o_ref[...] = jnp.maximum(v * sc_ref[0] + sh_ref[0], 0.0)


def _choose_row_block(hp, wp, cin_p, cm_p, cout_p, cbytes, budget_bytes=8 << 20):
    """Largest divisor of the pooled height whose per-tile working set fits the budget."""
    per_row = wp * (
        2 * (2 * 2 * cin_p) * cbytes    # phase-1 pooled-input block (double-buffered)
        + 3 * 3 * cin_p * cbytes        # fused-tap tensors (q + shifted copies), ph1
        + 4 * cm_p * cbytes             # y1 block written then re-read (double-buffered)
        + 3 * 3 * cm_p * cbytes         # fused-tap tensors, ph2
        + 4 * cout_p * 4)               # f32 accumulator + y2 / out blocks
    t = int(max(1, min(hp, budget_bytes // max(per_row, 1))))
    while hp % t:
        t -= 1
    return t


def down_forward(x_nchw, params, *, eps=1e-5, compute_dtype=jnp.bfloat16,
                 row_block=None, vmem_limit_bytes=48 * 1024 * 1024):
    """Down(in_channels, out_channels).forward — tiled Pallas TPU implementation.

    x_nchw : (N, Cin, H, W) float32 (PyTorch layout).
    params : (w1, g1, b1, w2, g2, b2); conv weights in PyTorch OIHW layout
             (Cout, Cin, 3, 3), BN gamma/beta as 1-D vectors.
    Returns (N, Cout, H//2, W//2) float32 using training-mode (batch) BN stats.
    """
    w1, g1, b1, w2, g2, b2 = params
    n, cin, h, w = x_nchw.shape
    h_ev, w_ev = (h // 2) * 2, (w // 2) * 2          # MaxPool2d(2) floor semantics
    hp, wp = h_ev // 2, w_ev // 2
    cm, cout = w1.shape[0], w2.shape[0]
    cdt = jnp.dtype(compute_dtype)
    cbytes = cdt.itemsize

    cin_p = _round_up(cin, _LANE)
    cm_p = _round_up(cm, _LANE)
    cout_p = _round_up(cout, _LANE)

    # ---- glue: NCHW -> NHWC, lane-pad channels, fold the 2x2 pool window so the
    # kernel reduces it with two cheap maxes (H parity -> axis 2, W parity -> lanes).
    x = jnp.transpose(x_nchw[:, :, :h_ev, :w_ev], (0, 2, 3, 1)).astype(cdt)
    x = _pad_axis(x, 3, cin_p).reshape(n, hp, 2, wp, 2 * cin_p)

    # ---- weight slabs: OIHW -> HWIO -> (dx, dy*Ci_p + ci, co), MXU input dtype.
    def weight_slab(w_oihw, ci_p, co_p):
        w_hwio = jnp.transpose(w_oihw.astype(jnp.float32), (2, 3, 1, 0))
        w_hwio = _pad_axis(_pad_axis(w_hwio, 2, ci_p), 3, co_p)
        return jnp.transpose(w_hwio, (1, 0, 2, 3)).reshape(3, 3 * ci_p, co_p).astype(cdt)

    w1_slab = weight_slab(w1, cin_p, cm_p)
    w2_slab = weight_slab(w2, cm_p, cout_p)
    g1p = _pad_axis(jnp.asarray(g1).reshape(-1).astype(jnp.float32), 0, cm_p)
    b1p = _pad_axis(jnp.asarray(b1).reshape(-1).astype(jnp.float32), 0, cm_p)
    g2p = _pad_axis(jnp.asarray(g2).reshape(-1).astype(jnp.float32), 0, cout_p)
    b2p = _pad_axis(jnp.asarray(b2).reshape(-1).astype(jnp.float32), 0, cout_p)

    th = row_block if row_block is not None else _choose_row_block(
        hp, wp, cin_p, cm_p, cout_p, cbytes)
    if hp % th:
        raise ValueError(f"row_block={th} must divide pooled height {hp}")
    gh = hp // th
    grid = (n, gh)

    cparams = pltpu.CompilerParams(
        dimension_semantics=("parallel", "parallel"),   # batch x row-blocks; megacore
        vmem_limit_bytes=vmem_limit_bytes)

    # Haloed row-block views of an (N, Hp, ...) array: a main block of `th` pooled
    # rows plus single-row halo blocks clamped at the image edge (zeroed in-kernel).
    def row_specs(blk_tail, zero_tail):
        main = pl.BlockSpec((1, th) + blk_tail, lambda b, i: (b, i) + zero_tail)
        top = pl.BlockSpec((1, 1) + blk_tail,
                           lambda b, i: (b, jnp.maximum(i * th - 1, 0)) + zero_tail)
        bot = pl.BlockSpec((1, 1) + blk_tail,
                           lambda b, i: (b, jnp.minimum(i * th + th, hp - 1)) + zero_tail)
        return main, top, bot

    # ---------------- phase 1: maxpool + conv1 (+ BN1 partial stats) ----------------
    xm, xt, xb = row_specs((2, wp, 2 * cin_p), (0, 0, 0))
    w1_spec = pl.BlockSpec((3, 3 * cin_p, cm_p), lambda b, i: (0, 0, 0))
    y1_spec = pl.BlockSpec((1, th, wp, cm_p), lambda b, i: (b, i, 0, 0))
    st1_spec = pl.BlockSpec((1, 1, 2, cm_p), lambda b, i: (b, i, 0, 0))

    y1, st1 = pl.pallas_call(
        functools.partial(_pool_conv1_kernel, cin_p=cin_p, matmul_dtype=cdt),
        grid=grid,
        in_specs=[xm, xt, xb, w1_spec],
        out_specs=[y1_spec, st1_spec],
        out_shape=[jax.ShapeDtypeStruct((n, hp, wp, cm_p), cdt),
                   jax.ShapeDtypeStruct((n, gh, 2, cm_p), jnp.float32)],
        compiler_params=cparams,
    )(x, x, x, w1_slab)

    # ---- exact batch statistics (tiny per-channel glue reduction over the grid).
    count = float(n * hp * wp)

    def bn_scale_shift(partials, gamma, beta):
        s = jnp.sum(partials, axis=(0, 1))                    # (2, C)
        mu = s[0] / count
        var = jnp.maximum(s[1] / count - mu * mu, 0.0)        # one-pass, biased (training BN)
        scale = gamma * lax.rsqrt(var + eps)
        return scale.reshape(1, -1), (beta - mu * scale).reshape(1, -1)

    sc1, sh1 = bn_scale_shift(st1, g1p, b1p)

    # ---------------- phase 2: BN1 + ReLU + conv2 (+ BN2 partial stats) --------------
    ym, yt, yb = row_specs((wp, cm_p), (0, 0))
    vec_m = pl.BlockSpec((1, cm_p), lambda b, i: (0, 0))
    w2_spec = pl.BlockSpec((3, 3 * cm_p, cout_p), lambda b, i: (0, 0, 0))
    y2_spec = pl.BlockSpec((1, th, wp, cout_p), lambda b, i: (b, i, 0, 0))
    st2_spec = pl.BlockSpec((1, 1, 2, cout_p), lambda b, i: (b, i, 0, 0))

    y2, st2 = pl.pallas_call(
        functools.partial(_bn_conv2_kernel, matmul_dtype=cdt),
        grid=grid,
        in_specs=[ym, yt, yb, vec_m, vec_m, w2_spec],
        out_specs=[y2_spec, st2_spec],
        out_shape=[jax.ShapeDtypeStruct((n, hp, wp, cout_p), cdt),
                   jax.ShapeDtypeStruct((n, gh, 2, cout_p), jnp.float32)],
        compiler_params=cparams,
    )(y1, y1, y1, sc1, sh1, w2_slab)

    sc2, sh2 = bn_scale_shift(st2, g2p, b2p)

    # ---------------- phase 3: BN2 + ReLU -----------------------------------------
    vec_o = pl.BlockSpec((1, cout_p), lambda b, i: (0, 0))
    out = pl.pallas_call(
        _bn_relu_kernel,
        grid=grid,
        in_specs=[y2_spec, vec_o, vec_o],
        out_specs=pl.BlockSpec((1, th, wp, cout_p), lambda b, i: (b, i, 0, 0)),
        out_shape=jax.ShapeDtypeStruct((n, hp, wp, cout_p), jnp.float32),
        compiler_params=cparams,
    )(y2, sc2, sh2)

    # ---- glue: drop lane padding, back to NCHW.
    return jnp.transpose(out[..., :cout], (0, 3, 1, 2))


def down_reference(x_nchw, params, *, eps=1e-5):
    """Pure-JAX reference matching the PyTorch forward (training-mode BN)."""
    w1, g1, b1, w2, g2, b2 = params
    x = jnp.transpose(x_nchw, (0, 2, 3, 1)).astype(jnp.float32)
    h_ev, w_ev = (x.shape[1] // 2) * 2, (x.shape[2] // 2) * 2
    x = x[:, :h_ev, :w_ev]
    pooled = lax.reduce_window(x, -jnp.inf, lax.max, (1, 2, 2, 1), (1, 2, 2, 1), "VALID")

    def conv_bn_relu(h, w_oihw, g, b):
        w_hwio = jnp.transpose(w_oihw, (2, 3, 1, 0))
        y = lax.conv_general_dilated(h, w_hwio, (1, 1), "SAME",
                                     dimension_numbers=("NHWC", "HWIO", "NHWC"))
        mu = jnp.mean(y, axis=(0, 1, 2), keepdims=True)
        var = jnp.mean((y - mu) ** 2, axis=(0, 1, 2), keepdims=True)
        y = (y - mu) * lax.rsqrt(var + eps) * g.reshape(1, 1, 1, -1) + b.reshape(1, 1, 1, -1)
        return jnp.maximum(y, 0.0)

    h = conv_bn_relu(pooled, w1, g1, b1)
    h = conv_bn_relu(h, w2, g2, b2)
    return jnp.transpose(h, (0, 3, 1, 2))


if __name__ == "__main__":
    key = jax.random.PRNGKey(0)

    # Primary config from the module spec: Down(4, 8) on (2, 4, 16, 16).
    n, cin, h, w = 2, 4, 16, 16
    cm = cout = 8                        # DoubleConv mid_channels defaults to out_channels
    ks = jax.random.split(key, 7)
    x = jax.random.normal(ks[0], (n, cin, h, w), jnp.float32)
    params = (
        0.1 * jax.random.normal(ks[1], (cm, cin, 3, 3), jnp.float32),    # conv1 weight (OIHW)
        1.0 + 0.1 * jax.random.normal(ks[2], (cm,), jnp.float32),        # BN1 gamma
        0.1 * jax.random.normal(ks[3], (cm,), jnp.float32),              # BN1 beta
        0.1 * jax.random.normal(ks[4], (cout, cm, 3, 3), jnp.float32),   # conv2 weight (OIHW)
        1.0 + 0.1 * jax.random.normal(ks[5], (cout,), jnp.float32),      # BN2 gamma
        0.1 * jax.random.normal(ks[6], (cout,), jnp.float32),            # BN2 beta
    )

    ref = jax.block_until_ready(down_reference(x, params))

    # f32 MXU path over a 2-tile row grid (exercises the halo blocks): tight tolerance.
    out_f32 = jax.block_until_ready(
        down_forward(x, params, compute_dtype=jnp.float32, row_block=4))
    np.testing.assert_allclose(np.asarray(out_f32), np.asarray(ref), rtol=5e-4, atol=5e-4)
    assert out_f32.shape == (n, cout, h // 2, w // 2)

    # Default bf16-MXU path (f32 accumulation + f32 BN math); tolerance reflects bf16 inputs.
    out_bf16 = jax.block_until_ready(
        down_forward(x, params, compute_dtype=jnp.bfloat16, row_block=2))
    np.testing.assert_allclose(np.asarray(out_bf16), np.asarray(ref), rtol=8e-2, atol=8e-2)

    # Secondary config: channel counts needing lane padding + automatic row-block choice.
    n2, ci2, co2, hh, ww = 1, 3, 5, 8, 32
    ks2 = jax.random.split(jax.random.PRNGKey(1), 7)
    x2 = jax.random.normal(ks2[0], (n2, ci2, hh, ww), jnp.float32)
    params2 = (
        0.1 * jax.random.normal(ks2[1], (co2, ci2, 3, 3), jnp.float32),
        1.0 + 0.1 * jax.random.normal(ks2[2], (co2,), jnp.float32),
        0.1 * jax.random.normal(ks2[3], (co2,), jnp.float32),
        0.1 * jax.random.normal(ks2[4], (co2, co2, 3, 3), jnp.float32),
        1.0 + 0.1 * jax.random.normal(ks2[5], (co2,), jnp.float32),
        0.1 * jax.random.normal(ks2[6], (co2,), jnp.float32),
    )
    out2 = jax.block_until_ready(down_forward(x2, params2, compute_dtype=jnp.float32))
    ref2 = jax.block_until_ready(down_reference(x2, params2))
    np.testing.assert_allclose(np.asarray(out2), np.asarray(ref2), rtol=5e-4, atol=5e-4)

    print("KERNEL_OK")
</pallas_src>

<mosaic_0001>
module attributes {stable_mosaic.version = 11 : i64} {
  func.func @_pool_conv1_kernel(%arg0: i32, %arg1: i32, %arg2: memref<1x4x2x8x256xf32, #tpu.memory_space<vmem>>, %arg3: memref<1x1x2x8x256xf32, #tpu.memory_space<vmem>>, %arg4: memref<1x1x2x8x256xf32, #tpu.memory_space<vmem>>, %arg5: memref<3x384x128xf32, #tpu.memory_space<vmem>>, %arg6: memref<1x4x8x128xf32, #tpu.memory_space<vmem>>, %arg7: memref<1x1x2x128xf32, #tpu.memory_space<vmem>>) attributes {dimension_semantics = [#tpu.dimension_semantics<parallel>, #tpu.dimension_semantics<parallel>], iteration_bounds = array<i64: 2, 2>, scalar_prefetch = 0 : i64, scratch_operands = 0 : i64, tpu.core_type = #tpu.core_type<tc>, window_params = [{transform_indices = @transform_0, window_bounds = array<i64: 1, 4, 2, 8, 256>}, {transform_indices = @transform_1, window_bounds = array<i64: 1, 1, 2, 8, 256>}, {transform_indices = @transform_2, window_bounds = array<i64: 1, 1, 2, 8, 256>}, {pipeline_mode = #tpu.pipeline_mode<synchronous>, transform_indices = @transform_3, window_bounds = array<i64: 3, 384, 128>}, {transform_indices = @transform_4, window_bounds = array<i64: 1, 4, 8, 128>}, {transform_indices = @transform_5, window_bounds = array<i64: 1, 1, 2, 128>}]} {
    %c0 = arith.constant 0 : index
    %c0_0 = arith.constant 0 : index
    %c0_1 = arith.constant 0 : index
    %c0_2 = arith.constant 0 : index
    %c0_3 = arith.constant 0 : index
    %0 = vector.load %arg2[%c0, %c0_0, %c0_1, %c0_2, %c0_3] : memref<1x4x2x8x256xf32, #tpu.memory_space<vmem>>, vector<1x4x2x8x256xf32>
    %1 = vector.shape_cast %0 : vector<1x4x2x8x256xf32> to vector<4x2x8x256xf32>
    %2 = vector.extract_strided_slice %1 {offsets = [0, 0, 0, 0], sizes = [4, 1, 8, 256], strides = [1, 1, 1, 1]} : vector<4x2x8x256xf32> to vector<4x1x8x256xf32>
    %3 = vector.shape_cast %2 : vector<4x1x8x256xf32> to vector<4x8x256xf32>
    %4 = vector.extract_strided_slice %1 {offsets = [0, 1, 0, 0], sizes = [4, 1, 8, 256], strides = [1, 1, 1, 1]} : vector<4x2x8x256xf32> to vector<4x1x8x256xf32>
    %5 = vector.shape_cast %4 : vector<4x1x8x256xf32> to vector<4x8x256xf32>
    %6 = arith.maximumf %3, %5 : vector<4x8x256xf32>
    %7 = vector.extract_strided_slice %6 {offsets = [0, 0, 0], sizes = [4, 8, 128], strides = [1, 1, 1]} : vector<4x8x256xf32> to vector<4x8x128xf32>
    %8 = vector.extract_strided_slice %6 {offsets = [0, 0, 128], sizes = [4, 8, 128], strides = [1, 1, 1]} : vector<4x8x256xf32> to vector<4x8x128xf32>
    %9 = arith.maximumf %7, %8 : vector<4x8x128xf32>
    %c0_4 = arith.constant 0 : index
    %c0_5 = arith.constant 0 : index
    %c0_6 = arith.constant 0 : index
    %c0_7 = arith.constant 0 : index
    %c0_8 = arith.constant 0 : index
    %10 = vector.load %arg3[%c0_4, %c0_5, %c0_6, %c0_7, %c0_8] : memref<1x1x2x8x256xf32, #tpu.memory_space<vmem>>, vector<1x1x2x8x256xf32>
    %11 = vector.shape_cast %10 : vector<1x1x2x8x256xf32> to vector<1x2x8x256xf32>
    %12 = vector.extract_strided_slice %11 {offsets = [0, 0, 0, 0], sizes = [1, 1, 8, 256], strides = [1, 1, 1, 1]} : vector<1x2x8x256xf32> to vector<1x1x8x256xf32>
    %13 = vector.shape_cast %12 : vector<1x1x8x256xf32> to vector<1x8x256xf32>
    %14 = vector.extract_strided_slice %11 {offsets = [0, 1, 0, 0], sizes = [1, 1, 8, 256], strides = [1, 1, 1, 1]} : vector<1x2x8x256xf32> to vector<1x1x8x256xf32>
    %15 = vector.shape_cast %14 : vector<1x1x8x256xf32> to vector<1x8x256xf32>
    %16 = arith.maximumf %13, %15 : vector<1x8x256xf32>
    %17 = vector.extract_strided_slice %16 {offsets = [0, 0, 0], sizes = [1, 8, 128], strides = [1, 1, 1]} : vector<1x8x256xf32> to vector<1x8x128xf32>
    %18 = vector.extract_strided_slice %16 {offsets = [0, 0, 128], sizes = [1, 8, 128], strides = [1, 1, 1]} : vector<1x8x256xf32> to vector<1x8x128xf32>
    %19 = arith.maximumf %17, %18 : vector<1x8x128xf32>
    %c0_i32 = arith.constant 0 : i32
    %20 = arith.cmpi sgt, %arg1, %c0_i32 : i32
    %21 = arith.extui %20 : i1 to i32
    %22 = arith.sitofp %21 : i32 to f32
    %23 = vector.broadcast %22 : f32 to vector<1x8x128xf32>
    %24 = arith.mulf %19, %23 : vector<1x8x128xf32>
    %c0_9 = arith.constant 0 : index
    %c0_10 = arith.constant 0 : index
    %c0_11 = arith.constant 0 : index
    %c0_12 = arith.constant 0 : index
    %c0_13 = arith.constant 0 : index
    %25 = vector.load %arg4[%c0_9, %c0_10, %c0_11, %c0_12, %c0_13] : memref<1x1x2x8x256xf32, #tpu.memory_space<vmem>>, vector<1x1x2x8x256xf32>
    %26 = vector.shape_cast %25 : vector<1x1x2x8x256xf32> to vector<1x2x8x256xf32>
    %27 = vector.extract_strided_slice %26 {offsets = [0, 0, 0, 0], sizes = [1, 1, 8, 256], strides = [1, 1, 1, 1]} : vector<1x2x8x256xf32> to vector<1x1x8x256xf32>
    %28 = vector.shape_cast %27 : vector<1x1x8x256xf32> to vector<1x8x256xf32>
    %29 = vector.extract_strided_slice %26 {offsets = [0, 1, 0, 0], sizes = [1, 1, 8, 256], strides = [1, 1, 1, 1]} : vector<1x2x8x256xf32> to vector<1x1x8x256xf32>
    %30 = vector.shape_cast %29 : vector<1x1x8x256xf32> to vector<1x8x256xf32>
    %31 = arith.maximumf %28, %30 : vector<1x8x256xf32>
    %32 = vector.extract_strided_slice %31 {offsets = [0, 0, 0], sizes = [1, 8, 128], strides = [1, 1, 1]} : vector<1x8x256xf32> to vector<1x8x128xf32>
    %33 = vector.extract_strided_slice %31 {offsets = [0, 0, 128], sizes = [1, 8, 128], strides = [1, 1, 1]} : vector<1x8x256xf32> to vector<1x8x128xf32>
    %34 = arith.maximumf %32, %33 : vector<1x8x128xf32>
    %c1_i32 = arith.constant 1 : i32
    %35 = arith.cmpi slt, %arg1, %c1_i32 : i32
    %36 = arith.extui %35 : i1 to i32
    %37 = arith.sitofp %36 : i32 to f32
    %38 = vector.broadcast %37 : f32 to vector<1x8x128xf32>
    %39 = arith.mulf %34, %38 : vector<1x8x128xf32>
    %40 = tpu.concatenate %24, %9, %39 in 0 : vector<1x8x128xf32>, vector<4x8x128xf32>, vector<1x8x128xf32> -> vector<6x8x128xf32>
    %41 = vector.extract_strided_slice %40 {offsets = [0, 0, 0], sizes = [4, 8, 128], strides = [1, 1, 1]} : vector<6x8x128xf32> to vector<4x8x128xf32>
    %42 = vector.extract_strided_slice %40 {offsets = [1, 0, 0], sizes = [4, 8, 128], strides = [1, 1, 1]} : vector<6x8x128xf32> to vector<4x8x128xf32>
    %43 = vector.extract_strided_slice %40 {offsets = [2, 0, 0], sizes = [4, 8, 128], strides = [1, 1, 1]} : vector<6x8x128xf32> to vector<4x8x128xf32>
    %44 = tpu.concatenate %41, %42, %43 in 2 : vector<4x8x128xf32>, vector<4x8x128xf32>, vector<4x8x128xf32> -> vector<4x8x384xf32>
    %cst = arith.constant 0.000000e+00 : f32
    %45 = vector.broadcast %cst : f32 to vector<4x1x384xf32>
    %46 = vector.extract_strided_slice %44 {offsets = [0, 0, 0], sizes = [4, 7, 384], strides = [1, 1, 1]} : vector<4x8x384xf32> to vector<4x7x384xf32>
    %47 = tpu.concatenate %45, %46 in 1 : vector<4x1x384xf32>, vector<4x7x384xf32> -> vector<4x8x384xf32>
    %cst_14 = arith.constant 0.000000e+00 : f32
    %48 = vector.broadcast %cst_14 : f32 to vector<4x1x384xf32>
    %49 = vector.extract_strided_slice %44 {offsets = [0, 1, 0], sizes = [4, 7, 384], strides = [1, 1, 1]} : vector<4x8x384xf32> to vector<4x7x384xf32>
    %50 = tpu.concatenate %49, %48 in 1 : vector<4x7x384xf32>, vector<4x1x384xf32> -> vector<4x8x384xf32>
    %c0_15 = arith.constant 0 : index
    %c0_16 = arith.constant 0 : index
    %c0_17 = arith.constant 0 : index
    %51 = vector.load %arg5[%c0_15, %c0_16, %c0_17] : memref<3x384x128xf32, #tpu.memory_space<vmem>>, vector<1x384x128xf32>
    %52 = vector.shape_cast %51 : vector<1x384x128xf32> to vector<384x128xf32>
    %53 = vector.shape_cast %47 : vector<4x8x384xf32> to vector<32x384xf32>
    %cst_18 = arith.constant dense<0.000000e+00> : vector<32x128xf32>
    %54 = tpu.matmul %53, %52, %cst_18 {dimension_numbers = #tpu.dot_dimension_numbers<[1], [0], [0], [1], [0, 0, 1, 1], [], []>} : vector<32x384xf32>, vector<384x128xf32>, vector<32x128xf32> -> vector<32x128xf32>
    %c1 = arith.constant 1 : index
    %c0_19 = arith.constant 0 : index
    %c0_20 = arith.constant 0 : index
    %55 = vector.load %arg5[%c1, %c0_19, %c0_20] : memref<3x384x128xf32, #tpu.memory_space<vmem>>, vector<1x384x128xf32>
    %56 = vector.shape_cast %55 : vector<1x384x128xf32> to vector<384x128xf32>
    %57 = vector.shape_cast %44 : vector<4x8x384xf32> to vector<32x384xf32>
    %cst_21 = arith.constant dense<0.000000e+00> : vector<32x128xf32>
    %58 = tpu.matmul %57, %56, %cst_21 {dimension_numbers = #tpu.dot_dimension_numbers<[1], [0], [0], [1], [0, 0, 1, 1], [], []>} : vector<32x384xf32>, vector<384x128xf32>, vector<32x128xf32> -> vector<32x128xf32>
    %59 = arith.addf %54, %58 : vector<32x128xf32>
    %c2 = arith.constant 2 : index
    %c0_22 = arith.constant 0 : index
    %c0_23 = arith.constant 0 : index
    %60 = vector.load %arg5[%c2, %c0_22, %c0_23] : memref<3x384x128xf32, #tpu.memory_space<vmem>>, vector<1x384x128xf32>
    %61 = vector.shape_cast %60 : vector<1x384x128xf32> to vector<384x128xf32>
    %62 = vector.shape_cast %50 : vector<4x8x384xf32> to vector<32x384xf32>
    %cst_24 = arith.constant dense<0.000000e+00> : vector<32x128xf32>
    %63 = tpu.matmul %62, %61, %cst_24 {dimension_numbers = #tpu.dot_dimension_numbers<[1], [0], [0], [1], [0, 0, 1, 1], [], []>} : vector<32x384xf32>, vector<384x128xf32>, vector<32x128xf32> -> vector<32x128xf32>
    %64 = arith.addf %59, %63 : vector<32x128xf32>
    %65 = vector.shape_cast %64 : vector<32x128xf32> to vector<1x4x8x128xf32>
    %c0_25 = arith.constant 0 : index
    %c0_26 = arith.constant 0 : index
    %c0_27 = arith.constant 0 : index
    %c0_28 = arith.constant 0 : index
    %66 = vector.load %arg6[%c0_25, %c0_26, %c0_27, %c0_28] : memref<1x4x8x128xf32, #tpu.memory_space<vmem>>, vector<1x4x8x128xf32>
    tpu.vector_store %arg6[%c0_25, %c0_26, %c0_27, %c0_28], %65 {strides = array<i32>} : memref<1x4x8x128xf32, #tpu.memory_space<vmem>>, vector<1x4x8x128xf32>,
    %cst_29 = arith.constant dense<0.000000e+00> : vector<128xf32>
    %67 = vector.multi_reduction <add>, %64, %cst_29 [0] : vector<32x128xf32> to vector<128xf32>
    %68 = vector.shape_cast %67 : vector<128xf32> to vector<1x128xf32>
    %69 = arith.mulf %64, %64 : vector<32x128xf32>
    %cst_30 = arith.constant dense<0.000000e+00> : vector<128xf32>
    %70 = vector.multi_reduction <add>, %69, %cst_30 [0] : vector<32x128xf32> to vector<128xf32>
    %71 = vector.shape_cast %70 : vector<128xf32> to vector<1x128xf32>
    %72 = tpu.concatenate %68, %71 in 0 : vector<1x128xf32>, vector<1x128xf32> -> vector<2x128xf32>
    %c0_31 = arith.constant 0 : index
    %c0_32 = arith.constant 0 : index
    %c0_33 = arith.constant 0 : index
    %c0_34 = arith.constant 0 : index
    %73 = vector.load %arg7[%c0_31, %c0_32, %c0_33, %c0_34] : memref<1x1x2x128xf32, #tpu.memory_space<vmem>>, vector<1x1x2x128xf32>
    %74 = vector.shape_cast %73 : vector<1x1x2x128xf32> to vector<2x128xf32>
    %75 = vector.shape_cast %72 : vector<2x128xf32> to vector<1x1x2x128xf32>
    tpu.vector_store %arg7[%c0_31, %c0_32, %c0_33, %c0_34], %75 {strides = array<i32>} : memref<1x1x2x128xf32, #tpu.memory_space<vmem>>, vector<1x1x2x128xf32>,
    return
  }
  func.func @transform_0(%arg0: i32, %arg1: i32) -> (i32, i32, i32, i32, i32) {
    %c0_i32 = arith.constant 0 : i32
    %c0_i32_0 = arith.constant 0 : i32
    %c0_i32_1 = arith.constant 0 : i32
    %c0_i32_2 = arith.constant 0 : i32
    return %arg0, %arg1, %c0_i32, %c0_i32_0, %c0_i32_1 : i32, i32, i32, i32, i32
  }
  func.func @transform_1(%arg0: i32, %arg1: i32) -> (i32, i32, i32, i32, i32) {
    %c4_i32 = arith.constant 4 : i32
    %0 = arith.muli %arg1, %c4_i32 : i32
    %c1_i32 = arith.constant 1 : i32
    %1 = arith.subi %0, %c1_i32 : i32
    %c0_i32 = arith.constant 0 : i32
    %2 = arith.maxsi %1, %c0_i32 : i32
    %c0_i32_0 = arith.constant 0 : i32
    %c0_i32_1 = arith.constant 0 : i32
    %c0_i32_2 = arith.constant 0 : i32
    %c0_i32_3 = arith.constant 0 : i32
    return %arg0, %2, %c0_i32_0, %c0_i32_1, %c0_i32_2 : i32, i32, i32, i32, i32
  }
  func.func @transform_2(%arg0: i32, %arg1: i32) -> (i32, i32, i32, i32, i32) {
    %c4_i32 = arith.constant 4 : i32
    %0 = arith.muli %arg1, %c4_i32 : i32
    %c4_i32_0 = arith.constant 4 : i32
    %1 = arith.addi %0, %c4_i32_0 : i32
    %c7_i32 = arith.constant 7 : i32
    %2 = arith.minsi %1, %c7_i32 : i32
    %c0_i32 = arith.constant 0 : i32
    %c0_i32_1 = arith.constant 0 : i32
    %c0_i32_2 = arith.constant 0 : i32
    %c0_i32_3 = arith.constant 0 : i32
    return %arg0, %2, %c0_i32, %c0_i32_1, %c0_i32_2 : i32, i32, i32, i32, i32
  }
  func.func @transform_3(%arg0: i32, %arg1: i32) -> (i32, i32, i32) {
    %c0_i32 = arith.constant 0 : i32
    %c0_i32_0 = arith.constant 0 : i32
    %c0_i32_1 = arith.constant 0 : i32
    %c0_i32_2 = arith.constant 0 : i32
    return %c0_i32, %c0_i32_0, %c0_i32_1 : i32, i32, i32
  }
  func.func @transform_4(%arg0: i32, %arg1: i32) -> (i32, i32, i32, i32) {
    %c0_i32 = arith.constant 0 : i32
    %c0_i32_0 = arith.constant 0 : i32
    %c0_i32_1 = arith.constant 0 : i32
    return %arg0, %arg1, %c0_i32, %c0_i32_0 : i32, i32, i32, i32
  }
  func.func @transform_5(%arg0: i32, %arg1: i32) -> (i32, i32, i32, i32) {
    %c0_i32 = arith.constant 0 : i32
    %c0_i32_0 = arith.constant 0 : i32
    %c0_i32_1 = arith.constant 0 : i32
    return %arg0, %arg1, %c0_i32, %c0_i32_0 : i32, i32, i32, i32
  }
}

</mosaic_0001>

<llo_original>
// kernel: tpu_custom_call.1
$region0: #{tpu_custom_call.1}
  #allocation0 [shape = 'u32[]', space=smem, size = 0x4, offset = 0x4, fixed_abs, tag = 'smem constant byte address 0x4 - core index']
  #allocation1 [shape = 'u32[72,128]{1,0:T(1,128)}', space=vmem, size = 0x9000, scoped, tag = 'internal scratch']
  %s0 = inlined_call_operand.hbm [shape: f32[2,8,2,8,256], index: 0, kind: input, shape index: {}]
  %s1 = inlined_call_operand.hbm [shape: f32[2,8,2,8,256], index: 1, kind: input, shape index: {}]
  %s2 = inlined_call_operand.hbm [shape: f32[2,8,2,8,256], index: 2, kind: input, shape index: {}]
  %s3 = inlined_call_operand.hbm [shape: f32[3,384,128], index: 3, kind: input, shape index: {}]
  %s4 = inlined_call_operand.hbm [shape: f32[2,8,8,128], index: 4, kind: output, shape index: {0}]
  %s5 = inlined_call_operand.hbm [shape: f32[2,2,2,128], index: 5, kind: output, shape index: {1}]
  %6 = xla_tuple %s4, %s5
  %s7 = sld [smem:[#allocation0]]
  $region73: #{tpu_custom_call.1} parent=0
    _
  %s9 = ssub.s32 1, %s7
  %s10 = scalar_select 0, %s9, %s7
  $region1: #{tpu_custom_call.1} parent=0
    #allocation2 [shape = 'u8[131072]{0}', space=vmem, size = 0x20000, scoped, tag = 'input window, operand 0']
    #allocation3 [shape = 's32[2]{0}', space=sflag, size = 0x8, scoped, tag = 'scoped memory for tpu_custom_call.1']
    #allocation4 [shape = 's32[2]{0}', space=sflag, size = 0x8, scoped, tag = 'scoped memory for tpu_custom_call.1']
    #allocation5 [shape = 'u8[32768]{0}', space=vmem, size = 0x8000, scoped, tag = 'input window, operand 1']
    #allocation6 [shape = 's32[2]{0}', space=sflag, size = 0x8, scoped, tag = 'scoped memory for tpu_custom_call.1']
    #allocation7 [shape = 'u8[32768]{0}', space=vmem, size = 0x8000, scoped, tag = 'input window, operand 2']
    #allocation8 [shape = 'u8[589824]{0}', space=vmem, size = 0x90000, scoped, tag = 'input window, operand 3, single buffered']
    #allocation9 [shape = 's32[1]{0}', space=sflag, size = 0x4, scoped, tag = 'scoped memory for tpu_custom_call.1']
    #allocation10 [shape = 'u8[32768]{0}', space=vmem, size = 0x8000, scoped, tag = 'output window, operand 0']
    #allocation11 [shape = 'u8[2048]{0}', space=vmem, size = 0x800, scoped, tag = 'output window, operand 1']
    #allocation12 [shape = 's32[2]{0}', space=sflag, size = 0x8, scoped, tag = 'scoped memory for tpu_custom_call.1']
    %11 = vsyncpa [#allocation3], 0
    %s12 = scalar_lea.sflag [#allocation3], 1
    %13 = vsyncpa %s12, 0
    %14 = vsyncpa [#allocation6], 0
    %s15 = scalar_lea.sflag [#allocation6], 1
    %16 = vsyncpa %s15, 0
    %17 = vsyncpa [#allocation9], 0
    %18 = vsyncpa [#allocation4], 0
    %s19 = scalar_lea.sflag [#allocation4], 1
    %20 = vsyncpa %s19, 0
    %21 = vsyncpa [#allocation12], 0
    %s22 = scalar_lea.sflag [#allocation12], 1
    %23 = vsyncpa %s22, 0
    loop: start=0, step=1, limit=6
    $region2: #{tpu_custom_call.1} parent=1 // loop_pre_header
      _
    $region3: #{tpu_custom_call.1} parent=1 // loop_header
      %s25 = sphi 0, %s29
      %p26 = scmp.ge.s32.totalorder %s25, 6
      %s32 = sphi 0, %s44
      %s33 = sphi 0, %s40
      %s34 = sphi 0, %s32
      %s35 = sphi 0, %s33
      %s36 = sphi 0, %s34
      %s37 = sphi 0, %s35
      %s49 = sphi 0, %s51
      %s52 = sphi 0, %s49
      %s53 = sphi 0, %s52
      %s69 = sphi 0, %s53
      %s85 = sphi 0, %s87
      %s88 = sphi 0, %s85
      %s89 = sphi 0, %s88
      %s105 = sphi 0, %s89
      %s121 = sphi 0, %s123
      %s124 = sphi 0, %s121
      %s125 = sphi 0, %s124
      %s141 = sphi 0, %s125
      %s145 = sphi 0, %s145
      %s147 = sphi 0, %s145
      %s148 = sphi 0, %s147
      %s162 = sphi 0, %s148
      %s170 = sphi 0, %s172
      %s173 = sphi 0, %s170
      %s174 = sphi 0, %s173
      %s190 = sphi 0, %s174
      %s198 = sphi 0, %s200
      %s201 = sphi 0, %s198
      %s202 = sphi 0, %s201
      %s218 = sphi 0, %s202
    $region4: #{tpu_custom_call.1} parent=1 // loop_header_branch
      %28 = sbr.rel (%p26) target = $region8
    $region5: #{tpu_custom_call.1} parent=1 // loop_body
      %s30 = ssub.s32 %s25, 1
      %s31 = ssub.s32 %s25, 2
      %s38 = sadd.s32 1, %s33
      %p39 = scmp.ge.s32.totalorder %s38, 2
      %s40 = scalar_select %p39, 0, %s38
      %s41 = sadd.s32 1, %s32
      %s42 = scalar_select %p39, %s41, %s32
      %p43 = scmp.ge.s32.totalorder %s42, 2
      %s44 = scalar_select %p43, 0, %s42
      %s45 = ssub.s32 %s32, %s44
      %s46 = ssub.s32 %s33, %s40
      %s47 = sor.u32 %s45, %s46
      %p48 = scmp.eq.s32.totalorder %s47, 0
      %s50 = sadd.s32 %s49, 1
      %s51 = scalar_select %p48, %s49, %s50
      %p54 = pneg %p48
      %p55 = scmp.eq.s32.totalorder %s25, 3
      %p56 = por %p54, %p55
      %p57 = scmp.ne.s32.totalorder %s49, %s52
      %p58 = scmp.eq.s32.totalorder %s25, 0
      %p59 = por %p57, %p58
      %p60 = scmp.ne.s32.totalorder %s49, %s52
      %p61 = scmp.eq.s32.totalorder %s30, 3
      %p62 = por %p60, %p61
      %p63 = scmp.ne.s32.totalorder %s52, %s53
      %p64 = scmp.eq.s32.totalorder %s30, 0
      %p65 = por %p63, %p64
      %p66 = scmp.ne.s32.totalorder %s52, %s53
      %p67 = scmp.eq.s32.totalorder %s31, 3
      %p68 = por %p66, %p67
      %p70 = scmp.ne.s32.totalorder %s53, %s69
      %p71 = scmp.eq.s32.totalorder %s31, 0
      %p72 = por %p70, %p71
      %s73 = smul.u32 %s33, 4
      %s74 = ssub.s32 %s73, 1
      %p75 = scmp.gt.s32.totalorder %s74, 0
      %s76 = scalar_select %p75, %s74, 0
      %s77 = smul.u32 %s40, 4
      %s78 = ssub.s32 %s77, 1
      %p79 = scmp.gt.s32.totalorder %s78, 0
      %s80 = scalar_select %p79, %s78, 0
      %s81 = ssub.s32 %s32, %s44
      %s82 = ssub.s32 %s76, %s80
      %s83 = sor.u32 %s81, %s82
      %p84 = scmp.eq.s32.totalorder %s83, 0
      %s86 = sadd.s32 %s85, 1
      %s87 = scalar_select %p84, %s85, %s86
      %p90 = pneg %p84
      %p91 = scmp.eq.s32.totalorder %s25, 3
      %p92 = por %p90, %p91
      %p93 = scmp.ne.s32.totalorder %s85, %s88
      %p94 = scmp.eq.s32.totalorder %s25, 0
      %p95 = por %p93, %p94
      %p96 = scmp.ne.s32.totalorder %s85, %s88
      %p97 = scmp.eq.s32.totalorder %s30, 3
      %p98 = por %p96, %p97
      %p99 = scmp.ne.s32.totalorder %s88, %s89
      %p100 = scmp.eq.s32.totalorder %s30, 0
      %p101 = por %p99, %p100
      %p102 = scmp.ne.s32.totalorder %s88, %s89
      %p103 = scmp.eq.s32.totalorder %s31, 3
      %p104 = por %p102, %p103
      %p106 = scmp.ne.s32.totalorder %s89, %s105
      %p107 = scmp.eq.s32.totalorder %s31, 0
      %p108 = por %p106, %p107
      %s109 = smul.u32 %s33, 4
      %s110 = sadd.s32 %s109, 4
      %p111 = scmp.lt.s32.totalorder %s110, 7
      %s112 = scalar_select %p111, %s110, 7
      %s113 = smul.u32 %s40, 4
      %s114 = sadd.s32 %s113, 4
      %p115 = scmp.lt.s32.totalorder %s114, 7
      %s116 = scalar_select %p115, %s114, 7
      %s117 = ssub.s32 %s32, %s44
      %s118 = ssub.s32 %s112, %s116
      %s119 = sor.u32 %s117, %s118
      %p120 = scmp.eq.s32.totalorder %s119, 0
      %s122 = sadd.s32 %s121, 1
      %s123 = scalar_select %p120, %s121, %s122
      %p126 = pneg %p120
      %p127 = scmp.eq.s32.totalorder %s25, 3
      %p128 = por %p126, %p127
      %p129 = scmp.ne.s32.totalorder %s121, %s124
      %p130 = scmp.eq.s32.totalorder %s25, 0
      %p131 = por %p129, %p130
      %p132 = scmp.ne.s32.totalorder %s121, %s124
      %p133 = scmp.eq.s32.totalorder %s30, 3
      %p134 = por %p132, %p133
      %p135 = scmp.ne.s32.totalorder %s124, %s125
      %p136 = scmp.eq.s32.totalorder %s30, 0
      %p137 = por %p135, %p136
      %p138 = scmp.ne.s32.totalorder %s124, %s125
      %p139 = scmp.eq.s32.totalorder %s31, 3
      %p140 = por %p138, %p139
      %p142 = scmp.ne.s32.totalorder %s125, %s141
      %p143 = scmp.eq.s32.totalorder %s31, 0
      %p144 = por %p142, %p143
      %s146 = sadd.s32 %s145, 1
      %p149 = scmp.eq.s32.totalorder %s25, 3
      %p150 = scmp.ne.s32.totalorder %s145, %s147
      %p151 = scmp.eq.s32.totalorder %s25, 0
      %p152 = por %p150, %p151
      %p153 = scmp.ne.s32.totalorder %s145, %s147
      %p154 = scmp.eq.s32.totalorder %s30, 3
      %p155 = por %p153, %p154
      %p156 = scmp.ne.s32.totalorder %s147, %s148
      %p157 = scmp.eq.s32.totalorder %s30, 0
      %p158 = por %p156, %p157
      %p159 = scmp.ne.s32.totalorder %s147, %s148
      %p160 = scmp.eq.s32.totalorder %s31, 3
      %p161 = por %p159, %p160
      %p163 = scmp.ne.s32.totalorder %s148, %s162
      %p164 = scmp.eq.s32.totalorder %s31, 0
      %p165 = por %p163, %p164
      %s166 = ssub.s32 %s32, %s44
      %s167 = ssub.s32 %s33, %s40
      %s168 = sor.u32 %s166, %s167
      %p169 = scmp.eq.s32.totalorder %s168, 0
      %s171 = sadd.s32 %s170, 1
      %s172 = scalar_select %p169, %s170, %s171
      %p175 = pneg %p169
      %p176 = scmp.eq.s32.totalorder %s25, 3
      %p177 = por %p175, %p176
      %p178 = scmp.ne.s32.totalorder %s170, %s173
      %p179 = scmp.eq.s32.totalorder %s25, 0
      %p180 = por %p178, %p179
      %p181 = scmp.ne.s32.totalorder %s170, %s173
      %p182 = scmp.eq.s32.totalorder %s30, 3
      %p183 = por %p181, %p182
      %p184 = scmp.ne.s32.totalorder %s173, %s174
      %p185 = scmp.eq.s32.totalorder %s30, 0
      %p186 = por %p184, %p185
      %p187 = scmp.ne.s32.totalorder %s173, %s174
      %p188 = scmp.eq.s32.totalorder %s31, 3
      %p189 = por %p187, %p188
      %p191 = scmp.ne.s32.totalorder %s174, %s190
      %p192 = scmp.eq.s32.totalorder %s31, 0
      %p193 = por %p191, %p192
      %s194 = ssub.s32 %s32, %s44
      %s195 = ssub.s32 %s33, %s40
      %s196 = sor.u32 %s194, %s195
      %p197 = scmp.eq.s32.totalorder %s196, 0
      %s199 = sadd.s32 %s198, 1
      %s200 = scalar_select %p197, %s198, %s199
      %p203 = pneg %p197
      %p204 = scmp.eq.s32.totalorder %s25, 3
      %p205 = por %p203, %p204
      %p206 = scmp.ne.s32.totalorder %s198, %s201
      %p207 = scmp.eq.s32.totalorder %s25, 0
      %p208 = por %p206, %p207
      %p209 = scmp.ne.s32.totalorder %s198, %s201
      %p210 = scmp.eq.s32.totalorder %s30, 3
      %p211 = por %p209, %p210
      %p212 = scmp.ne.s32.totalorder %s201, %s202
      %p213 = scmp.eq.s32.totalorder %s30, 0
      %p214 = por %p212, %p213
      %p215 = scmp.ne.s32.totalorder %s201, %s202
      %p216 = scmp.eq.s32.totalorder %s31, 3
      %p217 = por %p215, %p216
      %p219 = scmp.ne.s32.totalorder %s202, %s218
      %p220 = scmp.eq.s32.totalorder %s31, 0
      %p221 = por %p219, %p220
      %p222 = scmp.le.s32.totalorder 1, %s25
      %p223 = scmp.lt.s32.totalorder %s25, 5
      %p224 = pnand %p222, %p223
      %p225 = pneg %p224
      // Predicated region
      $region9: #{tpu_custom_call.1} parent=5 // pred_check
        _
      $region10: #{tpu_custom_call.1} parent=5 // pred_check_branch
        %227 = sbr.rel (%p224) target = $region12
      $region11: #{tpu_custom_call.1} parent=5 // pred_region
        %s228 = ssub.s32 %s25, 1
        // Predicated region
        $region13: #{tpu_custom_call.1} parent=11 // pred_check
          %p229 = pneg %p158
        $region14: #{tpu_custom_call.1} parent=11 // pred_check_branch
          %231 = sbr.rel (%p229) target = $region16
        $region15: #{tpu_custom_call.1} parent=11 // pred_region
          %233 = vsyncadd [#allocation9], 0
          %s234 = sshll.u32 %s3, 4
          %s235 = int_to_ptr.hbm [resolvable:$true] %s234
          %s236 = sshll.u32 [#allocation8], 4
          %s237 = int_to_ptr.vmem [resolvable:$true] %s236
          %242 = dma.hbm_to_vmem [thread:$0]  %s235, 18432, %s237, [#allocation9], 128, 128, 8
        $region16: #{tpu_custom_call.1} parent=11 // pred_fallthru
          _
      $region12: #{tpu_custom_call.1} parent=5 // pred_fallthru
        _
      %p243 = scmp.lt.s32.totalorder %s25, 4
      // Predicated region
      $region17: #{tpu_custom_call.1} parent=5 // pred_check
        %p244 = pneg %p243
      $region18: #{tpu_custom_call.1} parent=5 // pred_check_branch
        %246 = sbr.rel (%p244) target = $region20
      $region19: #{tpu_custom_call.1} parent=5 // pred_region
        // Predicated region
        $region21: #{tpu_custom_call.1} parent=19 // pred_check
          %p247 = pneg %p59
        $region22: #{tpu_custom_call.1} parent=19 // pred_check_branch
          %249 = sbr.rel (%p247) target = $region24
        $region23: #{tpu_custom_call.1} parent=19 // pred_region
          %s250 = sand.u32 %s49, 1
          %s251 = scalar_lea.sflag [#allocation3], %s250
          %s252 = sand.u32 %s49, 1
          %s253 = smul.addr %s252, 128
          %s254 = scalar_lea.vmem [#allocation2], %s253
          %s255 = smul.u32 4, %s33
          %257 = vsyncadd %s251, 0
          %s258 = smul.addr %s255, 4
          %s259 = smul.addr %s32, 32
          %s260 = sadd.s32 %s258, %s259
          %s261 = smul.addr %s260, 8
          %s262 = scalar_lea.hbm %s0, %s261
          %s263 = sshll.u32 %s262, 4
          %s264 = int_to_ptr.hbm [resolvable:$true] %s263
          %s265 = sshll.u32 %s254, 4
          %s266 = int_to_ptr.vmem [resolvable:$true] %s265
          %271 = dma.hbm_to_vmem [thread:$0]  %s264, 2048, %s266, %s251, 256, 256, 16
        $region24: #{tpu_custom_call.1} parent=19 // pred_fallthru
          _
        // Predicated region
        $region25: #{tpu_custom_call.1} parent=19 // pred_check
          %p272 = pneg %p95
        $region26: #{tpu_custom_call.1} parent=19 // pred_check_branch
          %274 = sbr.rel (%p272) target = $region28
        $region27: #{tpu_custom_call.1} parent=19 // pred_region
          %s275 = sand.u32 %s25, 1
          %s276 = scalar_lea.sflag [#allocation6], %s275
          %s277 = sand.u32 %s85, 1
          %s278 = smul.addr %s277, 32
          %s279 = scalar_lea.vmem [#allocation5], %s278
          %s280 = smul.u32 %s33, 4
          %s281 = ssub.s32 %s280, 1
          %p282 = scmp.gt.s32.totalorder %s281, 0
          %s283 = scalar_select %p282, %s281, 0
          %285 = vsyncadd %s276, 0
          %s286 = smul.addr %s283, 4
          %s287 = smul.addr %s32, 32
          %s288 = sadd.s32 %s286, %s287
          %s289 = smul.addr %s288, 8
          %s290 = scalar_lea.hbm %s1, %s289
          %s291 = sshll.u32 %s290, 4
          %s292 = int_to_ptr.hbm [resolvable:$true] %s291
          %s293 = sshll.u32 %s279, 4
          %s294 = int_to_ptr.vmem [resolvable:$true] %s293
          %299 = dma.hbm_to_vmem [thread:$0]  %s292, 512, %s294, %s276, 256, 256, 16
        $region28: #{tpu_custom_call.1} parent=19 // pred_fallthru
          _
        // Predicated region
        $region29: #{tpu_custom_call.1} parent=19 // pred_check
          %p300 = pneg %p131
        $region30: #{tpu_custom_call.1} parent=19 // pred_check_branch
          %302 = sbr.rel (%p300) target = $region32
        $region31: #{tpu_custom_call.1} parent=19 // pred_region
          %s303 = sand.u32 %s25, 1
          %s304 = scalar_lea.sflag [#allocation6], %s303
          %s305 = sand.u32 %s121, 1
          %s306 = smul.addr %s305, 32
          %s307 = scalar_lea.vmem [#allocation7], %s306
          %s308 = smul.u32 %s33, 4
          %s309 = sadd.s32 %s308, 4
          %p310 = scmp.lt.s32.totalorder %s309, 7
          %s311 = scalar_select %p310, %s309, 7
          %313 = vsyncadd %s304, 0
          %s314 = smul.addr %s311, 4
          %s315 = smul.addr %s32, 32
          %s316 = sadd.s32 %s314, %s315
          %s317 = smul.addr %s316, 8
          %s318 = scalar_lea.hbm %s2, %s317
          %s319 = sshll.u32 %s318, 4
          %s320 = int_to_ptr.hbm [resolvable:$true] %s319
          %s321 = sshll.u32 %s307, 4
          %s322 = int_to_ptr.vmem [resolvable:$true] %s321
          %327 = dma.hbm_to_vmem [thread:$0]  %s320, 512, %s322, %s304, 256, 256, 16
        $region32: #{tpu_custom_call.1} parent=19 // pred_fallthru
          _
      $region20: #{tpu_custom_call.1} parent=5 // pred_fallthru
        _
      %p328 = scmp.le.s32.totalorder 1, %s25
      %p329 = scmp.lt.s32.totalorder %s25, 5
      %p330 = pnand %p328, %p329
      %p331 = pneg %p330
      // Predicated region
      $region33: #{tpu_custom_call.1} parent=5 // pred_check
        _
      $region34: #{tpu_custom_call.1} parent=5 // pred_check_branch
        %333 = sbr.rel (%p330) target = $region36
      $region35: #{tpu_custom_call.1} parent=5 // pred_region
        %s334 = ssub.s32 %s25, 1
        %s335 = sand.u32 %s52, 1
        %s336 = scalar_lea.sflag [#allocation3], %s335
        %s337 = sand.u32 %s52, 1
        %s338 = smul.addr %s337, 128
        %s339 = scalar_lea.vmem [#allocation2], %s338
        // Predicated region
        $region37: #{tpu_custom_call.1} parent=35 // pred_check
          %p340 = pneg %p65
        $region38: #{tpu_custom_call.1} parent=35 // pred_check_branch
          %342 = sbr.rel (%p340) target = $region40
        $region39: #{tpu_custom_call.1} parent=35 // pred_region
          %344 = dma.done %s336, 2048
        $region40: #{tpu_custom_call.1} parent=35 // pred_fallthru
          _
        %s345 = sand.u32 %s30, 1
        %s346 = scalar_lea.sflag [#allocation6], %s345
        %s347 = sand.u32 %s88, 1
        %s348 = smul.addr %s347, 32
        %s349 = scalar_lea.vmem [#allocation5], %s348
        // Predicated region
        $region41: #{tpu_custom_call.1} parent=35 // pred_check
          %p350 = pneg %p101
        $region42: #{tpu_custom_call.1} parent=35 // pred_check_branch
          %352 = sbr.rel (%p350) target = $region44
        $region43: #{tpu_custom_call.1} parent=35 // pred_region
          %354 = dma.done %s346, 512
        $region44: #{tpu_custom_call.1} parent=35 // pred_fallthru
          _
        %s355 = sand.u32 %s30, 1
        %s356 = scalar_lea.sflag [#allocation6], %s355
        %s357 = sand.u32 %s124, 1
        %s358 = smul.addr %s357, 32
        %s359 = scalar_lea.vmem [#allocation7], %s358
        // Predicated region
        $region45: #{tpu_custom_call.1} parent=35 // pred_check
          %p360 = pneg %p137
        $region46: #{tpu_custom_call.1} parent=35 // pred_check_branch
          %362 = sbr.rel (%p360) target = $region48
        $region47: #{tpu_custom_call.1} parent=35 // pred_region
          %364 = dma.done %s356, 512
        $region48: #{tpu_custom_call.1} parent=35 // pred_fallthru
          _
        // Predicated region
        $region49: #{tpu_custom_call.1} parent=35 // pred_check
          %p365 = pneg %p158
        $region50: #{tpu_custom_call.1} parent=35 // pred_check_branch
          %367 = sbr.rel (%p365) target = $region52
        $region51: #{tpu_custom_call.1} parent=35 // pred_region
          %369 = dma.done [#allocation9], 18432
        $region52: #{tpu_custom_call.1} parent=35 // pred_fallthru
          _
        %s370 = sand.u32 %s52, 1
        %s371 = scalar_lea.sflag [#allocation3], %s370
        %s372 = sand.u32 %s52, 1
        %s373 = smul.addr %s372, 128
        %s374 = scalar_lea.vmem [#allocation2], %s373
        %p375 = pneg %p65
        %p376 = pneg %p62
        %s377 = sand.u32 %s30, 1
        %s378 = scalar_lea.sflag [#allocation6], %s377
        %s379 = sand.u32 %s88, 1
        %s380 = smul.addr %s379, 32
        %s381 = scalar_lea.vmem [#allocation5], %s380
        %p382 = pneg %p101
        %p383 = pneg %p98
        %s384 = sand.u32 %s30, 1
        %s385 = scalar_lea.sflag [#allocation6], %s384
        %s386 = sand.u32 %s124, 1
        %s387 = smul.addr %s386, 32
        %s388 = scalar_lea.vmem [#allocation7], %s387
        %p389 = pneg %p137
        %p390 = pneg %p134
        %p391 = pneg %p158
        %p392 = pneg %p155
        %p393 = pneg %p186
        %p394 = pneg %p183
        %s395 = sand.u32 %s173, 1
        %s396 = scalar_lea.sflag [#allocation4], %s395
        %s397 = sand.u32 %s173, 1
        %s398 = smul.addr %s397, 32
        %s399 = scalar_lea.vmem [#allocation10], %s398
        %p400 = pneg %p214
        %p401 = pneg %p211
        %s402 = sand.u32 %s201, 1
        %s403 = scalar_lea.sflag [#allocation12], %s402
        %s404 = sand.u32 %s201, 1
        %s405 = smul.addr %s404, 2
        %s406 = scalar_lea.vmem [#allocation11], %s405
        %s407 = smul.u32 4, %s35
        %s408 = smul.u32 %s35, 4
        %s409 = ssub.s32 %s408, 1
        %p410 = scmp.gt.s32.totalorder %s409, 0
        %s411 = scalar_select %p410, %s409, 0
        %s412 = smul.u32 %s35, 4
        %s413 = sadd.s32 %s412, 4
        %p414 = scmp.lt.s32.totalorder %s413, 7
        %s415 = scalar_select %p414, %s413, 7
        %s416 = smul.u32 4, %s35
        %v417 = vld [vmem:[%s339] sm:$0xff]
        %v418 = vld [vmem:[%s339 + $0x8] sm:$0xff]
        %v419 = vld [vmem:[%s339 + $0x10] sm:$0xff]
        %v420 = vld [vmem:[%s339 + $0x18] sm:$0xff]
        %v421 = vld [vmem:[%s339 + $0x20] sm:$0xff]
        %v422 = vld [vmem:[%s339 + $0x28] sm:$0xff]
        %v423 = vld [vmem:[%s339 + $0x30] sm:$0xff]
        %v424 = vld [vmem:[%s339 + $0x38] sm:$0xff]
        %v425 = vld [vmem:[%s339 + $0x40] sm:$0xff]
        %v426 = vld [vmem:[%s339 + $0x48] sm:$0xff]
        %v427 = vld [vmem:[%s339 + $0x50] sm:$0xff]
        %v428 = vld [vmem:[%s339 + $0x58] sm:$0xff]
        %v429 = vld [vmem:[%s339 + $0x60] sm:$0xff]
        %v430 = vld [vmem:[%s339 + $0x68] sm:$0xff]
        %v431 = vld [vmem:[%s339 + $0x70] sm:$0xff]
        %v432 = vld [vmem:[%s339 + $0x78] sm:$0xff]
        %v433 = vmax.f32 %v417, %v419
        %v434 = vmax.f32 %v418, %v420
        %v435 = vmax.f32 %v421, %v423
        %v436 = vmax.f32 %v422, %v424
        %v437 = vmax.f32 %v425, %v427
        %v438 = vmax.f32 %v426, %v428
        %v439 = vmax.f32 %v429, %v431
        %v440 = vmax.f32 %v430, %v432
        %v441 = vmax.f32 %v433, %v434
        %v442 = vmax.f32 %v435, %v436
        %v443 = vmax.f32 %v437, %v438
        %v444 = vmax.f32 %v439, %v440
        %v445 = vld [vmem:[%s349] sm:$0xff]
        %v446 = vld [vmem:[%s349 + $0x8] sm:$0xff]
        %v447 = vld [vmem:[%s349 + $0x10] sm:$0xff]
        %v448 = vld [vmem:[%s349 + $0x18] sm:$0xff]
        %v449 = vmax.f32 %v445, %v447
        %v450 = vmax.f32 %v446, %v448
        %v451 = vmax.f32 %v449, %v450
        %p452 = scmp.gt.s32.totalorder %s35, 0
        %s453 = scalar_select %p452, 1, 0
        %s454 = scvt.s32.f32 %s453
        %v455 = vstv %s454
        %v456 = vmul.f32 %v451, %v455
        %v457 = vld [vmem:[%s359] sm:$0xff]
        %v458 = vld [vmem:[%s359 + $0x8] sm:$0xff]
        %v459 = vld [vmem:[%s359 + $0x10] sm:$0xff]
        %v460 = vld [vmem:[%s359 + $0x18] sm:$0xff]
        %v461 = vmax.f32 %v457, %v459
        %v462 = vmax.f32 %v458, %v460
        %v463 = vmax.f32 %v461, %v462
        %p464 = scmp.lt.s32.totalorder %s35, 1
        %s465 = scalar_select %p464, 1, 0
        %s466 = scvt.s32.f32 %s465
        %v467 = vstv %s466
        %v468 = vmul.f32 %v463, %v467
        %v475 = vrot.slane %v456, 7
        %v476 = vrot.slane %v441, 7
        %v477 = vrot.slane %v442, 7
        %v478 = vrot.slane %v443, 7
        %v479 = vrot.slane %v444, 7
        %v480 = vrot.slane %v468, 7
        %vm487 = vcmask 1040384
        %v488 = vsel %vm487, 0.0, %v475
        %v489 = vsel %vm487, 0.0, %v476
        %v490 = vsel %vm487, 0.0, %v477
        %v491 = vsel %vm487, 0.0, %v478
        %v492 = vsel %vm487, 0.0, %v479
        %v493 = vsel %vm487, 0.0, %v480
        %v494 = vrot.slane %v456, 1
        %v495 = vrot.slane %v441, 1
        %v496 = vrot.slane %v442, 1
        %v497 = vrot.slane %v443, 1
        %v498 = vrot.slane %v444, 1
        %v499 = vrot.slane %v468, 1
        %vm506 = vcmask 1046528
        %v507 = vsel %vm506, %v494, 0.0
        %v508 = vsel %vm506, %v495, 0.0
        %v509 = vsel %vm506, %v496, 0.0
        %v510 = vsel %vm506, %v497, 0.0
        %v511 = vsel %vm506, %v498, 0.0
        %v512 = vsel %vm506, %v499, 0.0
        %v513 = vld [vmem:[#allocation8] sm:$0xff]
        %v514 = vld [vmem:[#allocation8 + $0x8] sm:$0xff]
        %v515 = vld [vmem:[#allocation8 + $0x10] sm:$0xff]
        %v516 = vld [vmem:[#allocation8 + $0x18] sm:$0xff]
        %v517 = vld [vmem:[#allocation8 + $0x20] sm:$0xff]
        %v518 = vld [vmem:[#allocation8 + $0x28] sm:$0xff]
        %v519 = vld [vmem:[#allocation8 + $0x30] sm:$0xff]
        %v520 = vld [vmem:[#allocation8 + $0x38] sm:$0xff]
        %v521 = vld [vmem:[#allocation8 + $0x40] sm:$0xff]
        %v522 = vld [vmem:[#allocation8 + $0x48] sm:$0xff]
        %v523 = vld [vmem:[#allocation8 + $0x50] sm:$0xff]
        %v524 = vld [vmem:[#allocation8 + $0x58] sm:$0xff]
        %v525 = vld [vmem:[#allocation8 + $0x60] sm:$0xff]
        %v526 = vld [vmem:[#allocation8 + $0x68] sm:$0xff]
        %v527 = vld [vmem:[#allocation8 + $0x70] sm:$0xff]
        %v528 = vld [vmem:[#allocation8 + $0x78] sm:$0xff]
        %v529 = vld [vmem:[#allocation8 + $0x80] sm:$0xff]
        %v530 = vld [vmem:[#allocation8 + $0x88] sm:$0xff]
        %v531 = vld [vmem:[#allocation8 + $0x90] sm:$0xff]
        %v532 = vld [vmem:[#allocation8 + $0x98] sm:$0xff]
        %v533 = vld [vmem:[#allocation8 + $0xa0] sm:$0xff]
        %v534 = vld [vmem:[#allocation8 + $0xa8] sm:$0xff]
        %v535 = vld [vmem:[#allocation8 + $0xb0] sm:$0xff]
        %v536 = vld [vmem:[#allocation8 + $0xb8] sm:$0xff]
        %v537 = vld [vmem:[#allocation8 + $0xc0] sm:$0xff]
        %v538 = vld [vmem:[#allocation8 + $0xc8] sm:$0xff]
        %v539 = vld [vmem:[#allocation8 + $0xd0] sm:$0xff]
        %v540 = vld [vmem:[#allocation8 + $0xd8] sm:$0xff]
        %v541 = vld [vmem:[#allocation8 + $0xe0] sm:$0xff]
        %v542 = vld [vmem:[#allocation8 + $0xe8] sm:$0xff]
        %v543 = vld [vmem:[#allocation8 + $0xf0] sm:$0xff]
        %v544 = vld [vmem:[#allocation8 + $0xf8] sm:$0xff]
        %v545 = vld [vmem:[#allocation8 + $0x100] sm:$0xff]
        %v546 = vld [vmem:[#allocation8 + $0x108] sm:$0xff]
        %v547 = vld [vmem:[#allocation8 + $0x110] sm:$0xff]
        %v548 = vld [vmem:[#allocation8 + $0x118] sm:$0xff]
        %v549 = vld [vmem:[#allocation8 + $0x120] sm:$0xff]
        %v550 = vld [vmem:[#allocation8 + $0x128] sm:$0xff]
        %v551 = vld [vmem:[#allocation8 + $0x130] sm:$0xff]
        %v552 = vld [vmem:[#allocation8 + $0x138] sm:$0xff]
        %v553 = vld [vmem:[#allocation8 + $0x140] sm:$0xff]
        %v554 = vld [vmem:[#allocation8 + $0x148] sm:$0xff]
        %v555 = vld [vmem:[#allocation8 + $0x150] sm:$0xff]
        %v556 = vld [vmem:[#allocation8 + $0x158] sm:$0xff]
        %v557 = vld [vmem:[#allocation8 + $0x160] sm:$0xff]
        %v558 = vld [vmem:[#allocation8 + $0x168] sm:$0xff]
        %v559 = vld [vmem:[#allocation8 + $0x170] sm:$0xff]
        %v560 = vld [vmem:[#allocation8 + $0x178] sm:$0xff]
        %s561 = scalar_lea.vmem [#allocation8], 384
        %v562 = vld [vmem:[%s561] sm:$0xff]
        %v563 = vld [vmem:[%s561 + $0x8] sm:$0xff]
        %v564 = vld [vmem:[%s561 + $0x10] sm:$0xff]
        %v565 = vld [vmem:[%s561 + $0x18] sm:$0xff]
        %v566 = vld [vmem:[%s561 + $0x20] sm:$0xff]
        %v567 = vld [vmem:[%s561 + $0x28] sm:$0xff]
        %v568 = vld [vmem:[%s561 + $0x30] sm:$0xff]
        %v569 = vld [vmem:[%s561 + $0x38] sm:$0xff]
        %v570 = vld [vmem:[%s561 + $0x40] sm:$0xff]
        %v571 = vld [vmem:[%s561 + $0x48] sm:$0xff]
        %v572 = vld [vmem:[%s561 + $0x50] sm:$0xff]
        %v573 = vld [vmem:[%s561 + $0x58] sm:$0xff]
        %v574 = vld [vmem:[%s561 + $0x60] sm:$0xff]
        %v575 = vld [vmem:[%s561 + $0x68] sm:$0xff]
        %v576 = vld [vmem:[%s561 + $0x70] sm:$0xff]
        %v577 = vld [vmem:[%s561 + $0x78] sm:$0xff]
        %v578 = vld [vmem:[%s561 + $0x80] sm:$0xff]
        %v579 = vld [vmem:[%s561 + $0x88] sm:$0xff]
        %v580 = vld [vmem:[%s561 + $0x90] sm:$0xff]
        %v581 = vld [vmem:[%s561 + $0x98] sm:$0xff]
        %v582 = vld [vmem:[%s561 + $0xa0] sm:$0xff]
        %v583 = vld [vmem:[%s561 + $0xa8] sm:$0xff]
        %v584 = vld [vmem:[%s561 + $0xb0] sm:$0xff]
        %v585 = vld [vmem:[%s561 + $0xb8] sm:$0xff]
        %v586 = vld [vmem:[%s561 + $0xc0] sm:$0xff]
        %v587 = vld [vmem:[%s561 + $0xc8] sm:$0xff]
        %v588 = vld [vmem:[%s561 + $0xd0] sm:$0xff]
        %v589 = vld [vmem:[%s561 + $0xd8] sm:$0xff]
        %v590 = vld [vmem:[%s561 + $0xe0] sm:$0xff]
        %v591 = vld [vmem:[%s561 + $0xe8] sm:$0xff]
        %v592 = vld [vmem:[%s561 + $0xf0] sm:$0xff]
        %v593 = vld [vmem:[%s561 + $0xf8] sm:$0xff]
        %v594 = vld [vmem:[%s561 + $0x100] sm:$0xff]
        %v595 = vld [vmem:[%s561 + $0x108] sm:$0xff]
        %v596 = vld [vmem:[%s561 + $0x110] sm:$0xff]
        %v597 = vld [vmem:[%s561 + $0x118] sm:$0xff]
        %v598 = vld [vmem:[%s561 + $0x120] sm:$0xff]
        %v599 = vld [vmem:[%s561 + $0x128] sm:$0xff]
        %v600 = vld [vmem:[%s561 + $0x130] sm:$0xff]
        %v601 = vld [vmem:[%s561 + $0x138] sm:$0xff]
        %v602 = vld [vmem:[%s561 + $0x140] sm:$0xff]
        %v603 = vld [vmem:[%s561 + $0x148] sm:$0xff]
        %v604 = vld [vmem:[%s561 + $0x150] sm:$0xff]
        %v605 = vld [vmem:[%s561 + $0x158] sm:$0xff]
        %v606 = vld [vmem:[%s561 + $0x160] sm:$0xff]
        %v607 = vld [vmem:[%s561 + $0x168] sm:$0xff]
        %v608 = vld [vmem:[%s561 + $0x170] sm:$0xff]
        %v609 = vld [vmem:[%s561 + $0x178] sm:$0xff]
        %610 = vmatpush.msra.mxu0 %v577
        %611 = vmatpush.msra.mxu0 %v576
        %612 = vmatpush.msra.mxu0 %v575
        %613 = vmatpush.msra.mxu0 %v574
        %614 = vmatpush.msra.mxu0 %v573
        %615 = vmatpush.msra.mxu0 %v572
        %616 = vmatpush.msra.mxu0 %v571
        %617 = vmatpush.msra.mxu0 %v570
        %618 = vmatpush.msra.mxu0 %v569
        %619 = vmatpush.msra.mxu0 %v568
        %620 = vmatpush.msra.mxu0 %v567
        %621 = vmatpush.msra.mxu0 %v566
        %622 = vmatpush.msra.mxu0 %v565
        %623 = vmatpush.msra.mxu0 %v564
        %624 = vmatpush.msra.mxu0 %v563
        %625 = vmatpush.msra.mxu0 %v562
        %626 = vmatmul.f32.gmra.mxu0 %v456
        %v627 = vpop.f32.mrf.mxu0
        %v628 = vadd.f32 0.0, %v627
        %629 = vmatmul.f32.gmra.mxu0 %v441
        %v630 = vpop.f32.mrf.mxu0
        %v631 = vadd.f32 0.0, %v630
        %632 = vmatmul.f32.gmra.mxu0 %v442
        %v633 = vpop.f32.mrf.mxu0
        %v634 = vadd.f32 0.0, %v633
        %635 = vmatmul.f32.gmra.mxu0 %v443
        %v636 = vpop.f32.mrf.mxu0
        %v637 = vadd.f32 0.0, %v636
        %638 = vdwg.mxu0
        %639 = vmatpush.msra.mxu0 %v593
        %640 = vmatpush.msra.mxu0 %v592
        %641 = vmatpush.msra.mxu0 %v591
        %642 = vmatpush.msra.mxu0 %v590
        %643 = vmatpush.msra.mxu0 %v589
        %644 = vmatpush.msra.mxu0 %v588
        %645 = vmatpush.msra.mxu0 %v587
        %646 = vmatpush.msra.mxu0 %v586
        %647 = vmatpush.msra.mxu0 %v585
        %648 = vmatpush.msra.mxu0 %v584
        %649 = vmatpush.msra.mxu0 %v583
        %650 = vmatpush.msra.mxu0 %v582
        %651 = vmatpush.msra.mxu0 %v581
        %652 = vmatpush.msra.mxu0 %v580
        %653 = vmatpush.msra.mxu0 %v579
        %654 = vmatpush.msra.mxu0 %v578
        %655 = vmatmul.f32.gmra.mxu0 %v441
        %v656 = vpop.f32.mrf.mxu0
        %v657 = vadd.f32 %v628, %v656
        %658 = vmatmul.f32.gmra.mxu0 %v442
        %v659 = vpop.f32.mrf.mxu0
        %v660 = vadd.f32 %v631, %v659
        %661 = vmatmul.f32.gmra.mxu0 %v443
        %v662 = vpop.f32.mrf.mxu0
        %v663 = vadd.f32 %v634, %v662
        %664 = vmatmul.f32.gmra.mxu0 %v444
        %v665 = vpop.f32.mrf.mxu0
        %v666 = vadd.f32 %v637, %v665
        %667 = vdwg.mxu0
        %668 = vmatpush.msra.mxu0 %v609
        %669 = vmatpush.msra.mxu0 %v608
        %670 = vmatpush.msra.mxu0 %v607
        %671 = vmatpush.msra.mxu0 %v606
        %672 = vmatpush.msra.mxu0 %v605
        %673 = vmatpush.msra.mxu0 %v604
        %674 = vmatpush.msra.mxu0 %v603
        %675 = vmatpush.msra.mxu0 %v602
        %676 = vmatpush.msra.mxu0 %v601
        %677 = vmatpush.msra.mxu0 %v600
        %678 = vmatpush.msra.mxu0 %v599
        %679 = vmatpush.msra.mxu0 %v598
        %680 = vmatpush.msra.mxu0 %v597
        %681 = vmatpush.msra.mxu0 %v596
        %682 = vmatpush.msra.mxu0 %v595
        %683 = vmatpush.msra.mxu0 %v594
        %684 = vmatmul.f32.gmra.mxu0 %v442
        %v685 = vpop.f32.mrf.mxu0
        %v686 = vadd.f32 %v657, %v685
        %687 = vmatmul.f32.gmra.mxu0 %v443
        %v688 = vpop.f32.mrf.mxu0
        %v689 = vadd.f32 %v660, %v688
        %690 = vmatmul.f32.gmra.mxu0 %v444
        %v691 = vpop.f32.mrf.mxu0
        %v692 = vadd.f32 %v663, %v691
        %693 = vmatmul.f32.gmra.mxu0 %v468
        %v694 = vpop.f32.mrf.mxu0
        %v695 = vadd.f32 %v666, %v694
        %696 = vdwg.mxu0
        %697 = vmatpush.msra.mxu0 %v528
        %698 = vmatpush.msra.mxu0 %v527
        %699 = vmatpush.msra.mxu0 %v526
        %700 = vmatpush.msra.mxu0 %v525
        %701 = vmatpush.msra.mxu0 %v524
        %702 = vmatpush.msra.mxu0 %v523
        %703 = vmatpush.msra.mxu0 %v522
        %704 = vmatpush.msra.mxu0 %v521
        %705 = vmatpush.msra.mxu0 %v520
        %706 = vmatpush.msra.mxu0 %v519
        %707 = vmatpush.msra.mxu0 %v518
        %708 = vmatpush.msra.mxu0 %v517
        %709 = vmatpush.msra.mxu0 %v516
        %710 = vmatpush.msra.mxu0 %v515
        %711 = vmatpush.msra.mxu0 %v514
        %712 = vmatpush.msra.mxu0 %v513
        %713 = vmatmul.f32.gmra.mxu0 %v488
        %v714 = vpop.f32.mrf.mxu0
        %v715 = vadd.f32 %v686, %v714
        %716 = vmatmul.f32.gmra.mxu0 %v489
        %v717 = vpop.f32.mrf.mxu0
        %v718 = vadd.f32 %v689, %v717
        %719 = vmatmul.f32.gmra.mxu0 %v490
        %v720 = vpop.f32.mrf.mxu0
        %v721 = vadd.f32 %v692, %v720
        %722 = vmatmul.f32.gmra.mxu0 %v491
        %v723 = vpop.f32.mrf.mxu0
        %v724 = vadd.f32 %v695, %v723
        %725 = vdwg.mxu0
        %726 = vmatpush.msra.mxu0 %v544
        %727 = vmatpush.msra.mxu0 %v543
        %728 = vmatpush.msra.mxu0 %v542
        %729 = vmatpush.msra.mxu0 %v541
        %730 = vmatpush.msra.mxu0 %v540
        %731 = vmatpush.msra.mxu0 %v539
        %732 = vmatpush.msra.mxu0 %v538
        %733 = vmatpush.msra.mxu0 %v537
        %734 = vmatpush.msra.mxu0 %v536
        %735 = vmatpush.msra.mxu0 %v535
        %736 = vmatpush.msra.mxu0 %v534
        %737 = vmatpush.msra.mxu0 %v533
        %738 = vmatpush.msra.mxu0 %v532
        %739 = vmatpush.msra.mxu0 %v531
        %740 = vmatpush.msra.mxu0 %v530
        %741 = vmatpush.msra.mxu0 %v529
        %742 = vmatmul.f32.gmra.mxu0 %v489
        %v743 = vpop.f32.mrf.mxu0
        %v744 = vadd.f32 %v715, %v743
        %745 = vmatmul.f32.gmra.mxu0 %v490
        %v746 = vpop.f32.mrf.mxu0
        %v747 = vadd.f32 %v718, %v746
        %748 = vmatmul.f32.gmra.mxu0 %v491
        %v749 = vpop.f32.mrf.mxu0
        %v750 = vadd.f32 %v721, %v749
        %751 = vmatmul.f32.gmra.mxu0 %v492
        %v752 = vpop.f32.mrf.mxu0
        %v753 = vadd.f32 %v724, %v752
        %754 = vdwg.mxu0
        %755 = vmatpush.msra.mxu0 %v560
        %756 = vmatpush.msra.mxu0 %v559
        %757 = vmatpush.msra.mxu0 %v558
        %758 = vmatpush.msra.mxu0 %v557
        %759 = vmatpush.msra.mxu0 %v556
        %760 = vmatpush.msra.mxu0 %v555
        %761 = vmatpush.msra.mxu0 %v554
        %762 = vmatpush.msra.mxu0 %v553
        %763 = vmatpush.msra.mxu0 %v552
        %764 = vmatpush.msra.mxu0 %v551
        %765 = vmatpush.msra.mxu0 %v550
        %766 = vmatpush.msra.mxu0 %v549
        %767 = vmatpush.msra.mxu0 %v548
        %768 = vmatpush.msra.mxu0 %v547
        %769 = vmatpush.msra.mxu0 %v546
        %770 = vmatpush.msra.mxu0 %v545
        %771 = vmatmul.f32.gmra.mxu0 %v490
        %v772 = vpop.f32.mrf.mxu0
        %v773 = vadd.f32 %v744, %v772
        %774 = vmatmul.f32.gmra.mxu0 %v491
        %v775 = vpop.f32.mrf.mxu0
        %v776 = vadd.f32 %v747, %v775
        %777 = vmatmul.f32.gmra.mxu0 %v492
        %v778 = vpop.f32.mrf.mxu0
        %v779 = vadd.f32 %v750, %v778
        %780 = vmatmul.f32.gmra.mxu0 %v493
        %v781 = vpop.f32.mrf.mxu0
        %v782 = vadd.f32 %v753, %v781
        %783 = vdwg.mxu0
        %s784 = scalar_lea.vmem [#allocation8], 768
        %v785 = vld [vmem:[%s784] sm:$0xff]
        %v786 = vld [vmem:[%s784 + $0x8] sm:$0xff]
        %v787 = vld [vmem:[%s784 + $0x10] sm:$0xff]
        %v788 = vld [vmem:[%s784 + $0x18] sm:$0xff]
        %v789 = vld [vmem:[%s784 + $0x20] sm:$0xff]
        %v790 = vld [vmem:[%s784 + $0x28] sm:$0xff]
        %v791 = vld [vmem:[%s784 + $0x30] sm:$0xff]
        %v792 = vld [vmem:[%s784 + $0x38] sm:$0xff]
        %v793 = vld [vmem:[%s784 + $0x40] sm:$0xff]
        %v794 = vld [vmem:[%s784 + $0x48] sm:$0xff]
        %v795 = vld [vmem:[%s784 + $0x50] sm:$0xff]
        %v796 = vld [vmem:[%s784 + $0x58] sm:$0xff]
        %v797 = vld [vmem:[%s784 + $0x60] sm:$0xff]
        %v798 = vld [vmem:[%s784 + $0x68] sm:$0xff]
        %v799 = vld [vmem:[%s784 + $0x70] sm:$0xff]
        %v800 = vld [vmem:[%s784 + $0x78] sm:$0xff]
        %v801 = vld [vmem:[%s784 + $0x80] sm:$0xff]
        %v802 = vld [vmem:[%s784 + $0x88] sm:$0xff]
        %v803 = vld [vmem:[%s784 + $0x90] sm:$0xff]
        %v804 = vld [vmem:[%s784 + $0x98] sm:$0xff]
        %v805 = vld [vmem:[%s784 + $0xa0] sm:$0xff]
        %v806 = vld [vmem:[%s784 + $0xa8] sm:$0xff]
        %v807 = vld [vmem:[%s784 + $0xb0] sm:$0xff]
        %v808 = vld [vmem:[%s784 + $0xb8] sm:$0xff]
        %v809 = vld [vmem:[%s784 + $0xc0] sm:$0xff]
        %v810 = vld [vmem:[%s784 + $0xc8] sm:$0xff]
        %v811 = vld [vmem:[%s784 + $0xd0] sm:$0xff]
        %v812 = vld [vmem:[%s784 + $0xd8] sm:$0xff]
        %v813 = vld [vmem:[%s784 + $0xe0] sm:$0xff]
        %v814 = vld [vmem:[%s784 + $0xe8] sm:$0xff]
        %v815 = vld [vmem:[%s784 + $0xf0] sm:$0xff]
        %v816 = vld [vmem:[%s784 + $0xf8] sm:$0xff]
        %v817 = vld [vmem:[%s784 + $0x100] sm:$0xff]
        %v818 = vld [vmem:[%s784 + $0x108] sm:$0xff]
        %v819 = vld [vmem:[%s784 + $0x110] sm:$0xff]
        %v820 = vld [vmem:[%s784 + $0x118] sm:$0xff]
        %v821 = vld [vmem:[%s784 + $0x120] sm:$0xff]
        %v822 = vld [vmem:[%s784 + $0x128] sm:$0xff]
        %v823 = vld [vmem:[%s784 + $0x130] sm:$0xff]
        %v824 = vld [vmem:[%s784 + $0x138] sm:$0xff]
        %v825 = vld [vmem:[%s784 + $0x140] sm:$0xff]
        %v826 = vld [vmem:[%s784 + $0x148] sm:$0xff]
        %v827 = vld [vmem:[%s784 + $0x150] sm:$0xff]
        %v828 = vld [vmem:[%s784 + $0x158] sm:$0xff]
        %v829 = vld [vmem:[%s784 + $0x160] sm:$0xff]
        %v830 = vld [vmem:[%s784 + $0x168] sm:$0xff]
        %v831 = vld [vmem:[%s784 + $0x170] sm:$0xff]
        %v832 = vld [vmem:[%s784 + $0x178] sm:$0xff]
        %833 = vmatpush.msra.mxu0 %v800
        %834 = vmatpush.msra.mxu0 %v799
        %835 = vmatpush.msra.mxu0 %v798
        %836 = vmatpush.msra.mxu0 %v797
        %837 = vmatpush.msra.mxu0 %v796
        %838 = vmatpush.msra.mxu0 %v795
        %839 = vmatpush.msra.mxu0 %v794
        %840 = vmatpush.msra.mxu0 %v793
        %841 = vmatpush.msra.mxu0 %v792
        %842 = vmatpush.msra.mxu0 %v791
        %843 = vmatpush.msra.mxu0 %v790
        %844 = vmatpush.msra.mxu0 %v789
        %845 = vmatpush.msra.mxu0 %v788
        %846 = vmatpush.msra.mxu0 %v787
        %847 = vmatpush.msra.mxu0 %v786
        %848 = vmatpush.msra.mxu0 %v785
        %849 = vmatmul.f32.gmra.mxu0 %v507
        %v850 = vpop.f32.mrf.mxu0
        %v851 = vadd.f32 0.0, %v850
        %852 = vmatmul.f32.gmra.mxu0 %v508
        %v853 = vpop.f32.mrf.mxu0
        %v854 = vadd.f32 0.0, %v853
        %855 = vmatmul.f32.gmra.mxu0 %v509
        %v856 = vpop.f32.mrf.mxu0
        %v857 = vadd.f32 0.0, %v856
        %858 = vmatmul.f32.gmra.mxu0 %v510
        %v859 = vpop.f32.mrf.mxu0
        %v860 = vadd.f32 0.0, %v859
        %861 = vdwg.mxu0
        %862 = vmatpush.msra.mxu0 %v816
        %863 = vmatpush.msra.mxu0 %v815
        %864 = vmatpush.msra.mxu0 %v814
        %865 = vmatpush.msra.mxu0 %v813
        %866 = vmatpush.msra.mxu0 %v812
        %867 = vmatpush.msra.mxu0 %v811
        %868 = vmatpush.msra.mxu0 %v810
        %869 = vmatpush.msra.mxu0 %v809
        %870 = vmatpush.msra.mxu0 %v808
        %871 = vmatpush.msra.mxu0 %v807
        %872 = vmatpush.msra.mxu0 %v806
        %873 = vmatpush.msra.mxu0 %v805
        %874 = vmatpush.msra.mxu0 %v804
        %875 = vmatpush.msra.mxu0 %v803
        %876 = vmatpush.msra.mxu0 %v802
        %877 = vmatpush.msra.mxu0 %v801
        %878 = vmatmul.f32.gmra.mxu0 %v508
        %v879 = vpop.f32.mrf.mxu0
        %v880 = vadd.f32 %v851, %v879
        %881 = vmatmul.f32.gmra.mxu0 %v509
        %v882 = vpop.f32.mrf.mxu0
        %v883 = vadd.f32 %v854, %v882
        %884 = vmatmul.f32.gmra.mxu0 %v510
        %v885 = vpop.f32.mrf.mxu0
        %v886 = vadd.f32 %v857, %v885
        %887 = vmatmul.f32.gmra.mxu0 %v511
        %v888 = vpop.f32.mrf.mxu0
        %v889 = vadd.f32 %v860, %v888
        %890 = vdwg.mxu0
        %891 = vmatpush.msra.mxu0 %v832
        %892 = vmatpush.msra.mxu0 %v831
        %893 = vmatpush.msra.mxu0 %v830
        %894 = vmatpush.msra.mxu0 %v829
        %895 = vmatpush.msra.mxu0 %v828
        %896 = vmatpush.msra.mxu0 %v827
        %897 = vmatpush.msra.mxu0 %v826
        %898 = vmatpush.msra.mxu0 %v825
        %899 = vmatpush.msra.mxu0 %v824
        %900 = vmatpush.msra.mxu0 %v823
        %901 = vmatpush.msra.mxu0 %v822
        %902 = vmatpush.msra.mxu0 %v821
        %903 = vmatpush.msra.mxu0 %v820
        %904 = vmatpush.msra.mxu0 %v819
        %905 = vmatpush.msra.mxu0 %v818
        %906 = vmatpush.msra.mxu0 %v817
        %907 = vmatmul.f32.gmra.mxu0 %v509
        %v908 = vpop.f32.mrf.mxu0
        %v909 = vadd.f32 %v880, %v908
        %910 = vmatmul.f32.gmra.mxu0 %v510
        %v911 = vpop.f32.mrf.mxu0
        %v912 = vadd.f32 %v883, %v911
        %913 = vmatmul.f32.gmra.mxu0 %v511
        %v914 = vpop.f32.mrf.mxu0
        %v915 = vadd.f32 %v886, %v914
        %916 = vmatmul.f32.gmra.mxu0 %v512
        %v917 = vpop.f32.mrf.mxu0
        %v918 = vadd.f32 %v889, %v917
        %919 = vdwg.mxu0
        %v920 = vadd.f32 %v773, %v909
        %v921 = vadd.f32 %v776, %v912
        %v922 = vadd.f32 %v779, %v915
        %v923 = vadd.f32 %v782, %v918
        %924 = vst [vmem:[%s399] sm:$0xff] %v920
        %925 = vst [vmem:[%s399 + $0x8] sm:$0xff] %v921
        %926 = vst [vmem:[%s399 + $0x10] sm:$0xff] %v922
        %927 = vst [vmem:[%s399 + $0x18] sm:$0xff] %v923
        %v928 = vadd.f32 %v920, %v921
        %v929 = vadd.f32 %v928, %v922
        %v930 = vadd.f32 %v929, %v923
        %v931 = vrot.slane %v930, 4
        %v932 = vadd.f32 %v930, %v931
        %v933 = vrot.slane %v932, 2
        %v934 = vadd.f32 %v932, %v933
        %v935 = vrot.slane %v934, 1
        %v936 = vadd.f32 %v934, %v935
        %v937 = vmul.f32 %v920, %v920
        %v938 = vmul.f32 %v921, %v921
        %v939 = vmul.f32 %v922, %v922
        %v940 = vmul.f32 %v923, %v923
        %v941 = vadd.f32 %v937, %v938
        %v942 = vadd.f32 %v941, %v939
        %v943 = vadd.f32 %v942, %v940
        %v944 = vrot.slane %v943, 4
        %v945 = vadd.f32 %v943, %v944
        %v946 = vrot.slane %v945, 2
        %v947 = vadd.f32 %v945, %v946
        %v948 = vrot.slane %v947, 1
        %v949 = vadd.f32 %v947, %v948
        %v950 = vsel %vm487, %v936, %v949
        %951 = vst [vmem:[%s406] sm:$0x3] %v950
        %s952 = sand.u32 %s173, 1
        %s953 = scalar_lea.sflag [#allocation4], %s952
        %s954 = sand.u32 %s173, 1
        %s955 = smul.addr %s954, 32
        %s956 = scalar_lea.vmem [#allocation10], %s955
        %s957 = sand.u32 %s201, 1
        %s958 = scalar_lea.sflag [#allocation12], %s957
        %s959 = sand.u32 %s201, 1
        %s960 = smul.addr %s959, 2
        %s961 = scalar_lea.vmem [#allocation11], %s960
        // Predicated region
        $region53: #{tpu_custom_call.1} parent=35 // pred_check
          %p962 = pneg %p183
        $region54: #{tpu_custom_call.1} parent=35 // pred_check_branch
          %964 = sbr.rel (%p962) target = $region56
        $region55: #{tpu_custom_call.1} parent=35 // pred_region
          %s965 = smul.u32 4, %s35
          %967 = vsyncadd %s953, 0
          %s968 = smul.addr %s34, 8
          %s969 = sadd.s32 %s965, %s968
          %s970 = smul.addr %s969, 8
          %s971 = scalar_lea.hbm %s4, %s970
          %s972 = sshll.u32 %s956, 4
          %s973 = int_to_ptr.vmem [resolvable:$true] %s972
          %s974 = sshll.u32 %s971, 4
          %s975 = int_to_ptr.hbm [resolvable:$true] %s974
          %980 = dma.vmem_to_hbm [thread:$0]  %s973, 512, %s975, %s953, 128, 128, 8
        $region56: #{tpu_custom_call.1} parent=35 // pred_fallthru
          _
        // Predicated region
        $region57: #{tpu_custom_call.1} parent=35 // pred_check
          %p981 = pneg %p211
        $region58: #{tpu_custom_call.1} parent=35 // pred_check_branch
          %983 = sbr.rel (%p981) target = $region60
        $region59: #{tpu_custom_call.1} parent=35 // pred_region
          %985 = vsyncadd %s958, 0
          %s986 = smul.addr %s34, 2
          %s987 = sadd.s32 %s35, %s986
          %s988 = smul.addr %s987, 2
          %s989 = scalar_lea.hbm %s5, %s988
          %s991 = sshll.u32 %s961, 4
          %s992 = int_to_ptr.vmem [resolvable:$true] %s991
          %s993 = sshll.u32 %s989, 4
          %s994 = int_to_ptr.hbm [resolvable:$true] %s993
          %996 = dma.vmem_to_hbm [thread:$0]  %s992, 32, %s994, %s958
        $region60: #{tpu_custom_call.1} parent=35 // pred_fallthru
          _
      $region36: #{tpu_custom_call.1} parent=5 // pred_fallthru
        _
      %p997 = scmp.le.s32.totalorder 2, %s25
      // Predicated region
      $region61: #{tpu_custom_call.1} parent=5 // pred_check
        %p998 = pneg %p997
      $region62: #{tpu_custom_call.1} parent=5 // pred_check_branch
        %1000 = sbr.rel (%p998) target = $region64
      $region63: #{tpu_custom_call.1} parent=5 // pred_region
        %s1001 = ssub.s32 %s25, 2
        // Predicated region
        $region65: #{tpu_custom_call.1} parent=63 // pred_check
          %p1002 = pneg %p189
        $region66: #{tpu_custom_call.1} parent=63 // pred_check_branch
          %1004 = sbr.rel (%p1002) target = $region68
        $region67: #{tpu_custom_call.1} parent=63 // pred_region
          %s1005 = sand.u32 %s174, 1
          %s1006 = scalar_lea.sflag [#allocation4], %s1005
          %s1007 = sand.u32 %s174, 1
          %s1008 = smul.addr %s1007, 32
          %s1009 = scalar_lea.vmem [#allocation10], %s1008
          %1011 = dma.done %s1006, 512
        $region68: #{tpu_custom_call.1} parent=63 // pred_fallthru
          _
        // Predicated region
        $region69: #{tpu_custom_call.1} parent=63 // pred_check
          %p1012 = pneg %p217
        $region70: #{tpu_custom_call.1} parent=63 // pred_check_branch
          %1014 = sbr.rel (%p1012) target = $region72
        $region71: #{tpu_custom_call.1} parent=63 // pred_region
          %s1015 = sand.u32 %s202, 1
          %s1016 = scalar_lea.sflag [#allocation12], %s1015
          %s1017 = sand.u32 %s202, 1
          %s1018 = smul.addr %s1017, 2
          %s1019 = scalar_lea.vmem [#allocation11], %s1018
          %1021 = dma.done %s1016, 32
        $region72: #{tpu_custom_call.1} parent=63 // pred_fallthru
          _
      $region64: #{tpu_custom_call.1} parent=5 // pred_fallthru
        _
    $region6: #{tpu_custom_call.1} parent=1 // loop_footer
      %s29 = sadd.s32 1, %s25
    $region7: #{tpu_custom_call.1} parent=1 // loop_footer_branch
      %24 = sbr.rel target = $region3
    $region8: #{tpu_custom_call.1} parent=1 // loop_exit
      _
    %1022 = vsyncpa [#allocation3], 1
    %s1023 = scalar_lea.sflag [#allocation3], 1
    %1024 = vsyncpa %s1023, 1
    %1025 = vsyncpa [#allocation6], 1
    %s1026 = scalar_lea.sflag [#allocation6], 1
    %1027 = vsyncpa %s1026, 1
    %1028 = vsyncpa [#allocation9], 1
    %1029 = vsyncpa [#allocation4], 1
    %s1030 = scalar_lea.sflag [#allocation4], 1
    %1031 = vsyncpa %s1030, 1
    %1032 = vsyncpa [#allocation12], 1
    %s1033 = scalar_lea.sflag [#allocation12], 1
    %1034 = vsyncpa %s1033, 1

</llo_original>
